<compile_context>
chip_gen: v7x
topology: tpu7x:2x2x1
jax: 0.10.0
libtpu: 0.0.40
codegen_flags: <defaults>
</compile_context>

<pallas_src>
import numpy as np

import jax
import jax.numpy as jnp
from jax import lax
from jax.experimental import pallas as pl
from jax.experimental.pallas import tpu as pltpu


def _wrap_i32(x):
    """Python int -> two's-complement int32 value."""
    x &= 0xFFFFFFFF
    return x - (1 << 32) if x >= (1 << 31) else x


# lowbias32 mixer / mantissa-trick constants (as int32-representable ints)
_MIX1 = _wrap_i32(0x7FEB352D)
_MIX2 = _wrap_i32(0x846CA68B)
_MANT_MASK = _wrap_i32(0x007FFFFE)   # keep 22 random mantissa bits
_ONE_BITS = _wrap_i32(0x3F800001)    # exponent of 1.0f, mantissa lsb forced 1


def _gumbel_onehot_kernel(seed_ref, theta_ref, lf_ref, rf_ref, out_ref):
    """One grid step: TS samples x full (B, C) block, full output width."""
    TS = out_ref.shape[0]
    B, C, L = theta_ref.shape
    Ll = lf_ref.shape[-1]
    Rl = rf_ref.shape[-1]
    shape = (TS, B, C, L)

    # ---- counter-based PRNG (pure int32 VPU ops; no HBM noise) -------------
    base = seed_ref[0] + pl.program_id(0) * (TS * B * C * L)
    s_i = lax.broadcasted_iota(jnp.int32, shape, 0)
    b_i = lax.broadcasted_iota(jnp.int32, shape, 1)
    c_i = lax.broadcasted_iota(jnp.int32, shape, 2)
    l_i = lax.broadcasted_iota(jnp.int32, shape, 3)
    x = ((s_i * B + b_i) * C + c_i) * L + l_i + base      # unique counter
    # lowbias32 mixer
    x = x ^ lax.shift_right_logical(x, np.int32(16))
    x = x * jnp.int32(_MIX1)
    x = x ^ lax.shift_right_logical(x, np.int32(15))
    x = x * jnp.int32(_MIX2)
    x = x ^ lax.shift_right_logical(x, np.int32(16))

    # uniform in (0, 1): mantissa bit-trick, strictly interior (lsb forced 1)
    m = (x & jnp.int32(_MANT_MASK)) | jnp.int32(_ONE_BITS)
    u = lax.bitcast_convert_type(m, jnp.float32) - 1.0     # [2^-23, 1)
    e = -jnp.log(u)                                        # Exp(1): 1 log/elem

    # ---- exponential-race Gumbel-max ---------------------------------------
    # argmax_c(theta_c + gumbel_c) == argmin_c e_c * exp(-theta_c).
    # exp(-theta) is computed once per (B, C, L) block (amortized over TS
    # samples).  No 1/tau scale: the hard forward argmax is scale-invariant.
    w = jnp.exp(-theta_ref[...].astype(jnp.float32))        # (B, C, L)
    z = e * w[None]                                          # (TS, B, C, L)

    # hard=True one-hot over the token/channel axis; first index wins ties.
    best = jnp.min(z, axis=2, keepdims=True)                 # (TS, B, 1, L)
    c_f = c_i.astype(jnp.float32)
    idx = jnp.min(jnp.where(z <= best, c_f, jnp.float32(C)),
                  axis=2, keepdims=True)                     # (TS, B, 1, L)
    y_hard = (c_f == idx).astype(out_ref.dtype)              # (TS, B, C, L)

    # ---- fused add_flanks: ONE full-width lane-dense store ------------------
    lf = jnp.broadcast_to(lf_ref[...][None], (TS, B, C, Ll)).astype(out_ref.dtype)
    rf = jnp.broadcast_to(rf_ref[...][None], (TS, B, C, Rl)).astype(out_ref.dtype)
    out_ref[...] = jnp.concatenate([lf, y_hard, rf], axis=-1)


def _samples_per_block(n_samples, bytes_per_sample, budget=2 << 20):
    """Largest divisor of n_samples whose (padded) output block fits `budget`,
    preferring configurations with an even number (>= 2) of grid steps so both
    v7x TensorCores get equal work and writeback/compute overlap."""
    cands = [d for d in range(1, n_samples + 1)
             if n_samples % d == 0 and d * bytes_per_sample <= budget]
    if not cands:
        return 1

    def rank(d):
        steps = n_samples // d
        return (steps >= 2 and steps % 2 == 0, steps >= 2, d)

    return max(cands, key=rank)


def gumbel_softmax_parameters_forward(theta, left_flank, right_flank, key,
                                      n_samples=1, tau=1.0, use_norm=False):
    """Equivalent of GumbelSoftmaxParameters.forward() (use_norm=False).

    theta:       (B, C, L)     trainable logits
    left_flank:  (B, C, L_l)   fixed one-hot flank
    right_flank: (B, C, L_r)   fixed one-hot flank
    returns:     (n_samples * B, C, L_l + L + L_r)
    """
    if use_norm:
        # TODO(synk): nn.InstanceNorm1d path not implemented.
        raise NotImplementedError("use_norm=True is not supported")
    del tau  # hard=True forward value is invariant to the positive 1/tau scale

    B, C, L = theta.shape
    Ll = left_flank.shape[-1]
    Lr = right_flank.shape[-1]
    Lt = Ll + L + Lr
    S = n_samples

    itemsize = jnp.dtype(theta.dtype).itemsize
    # honest VMEM footprint: sublane pad C->mult of 8, lane pad Lt->mult of 128
    c_pad = ((C + 7) // 8) * 8
    lt_pad = ((Lt + 127) // 128) * 128
    bytes_per_sample = B * c_pad * lt_pad * itemsize
    ts = _samples_per_block(S, bytes_per_sample)
    grid = (S // ts,)

    # NOTE(synk): single 31-bit seed per call (mixed per-element with global
    # counters); collisions across very many forward() calls are possible.
    seed = jax.random.randint(key, (1,), 0, jnp.iinfo(jnp.int32).max,
                              dtype=jnp.int32)

    n_logits = S * B * C * L
    cost = pl.CostEstimate(
        flops=32 * n_logits,                               # hash + race + onehot
        transcendentals=n_logits + grid[0] * B * C * L,    # 1 log/elem + exp/block
        bytes_accessed=(S * B * C * Lt + B * C * (L + Ll + Lr)) * itemsize)

    out4 = pl.pallas_call(
        _gumbel_onehot_kernel,
        out_shape=jax.ShapeDtypeStruct((S, B, C, Lt), theta.dtype),
        grid_spec=pltpu.PrefetchScalarGridSpec(
            num_scalar_prefetch=1,
            grid=grid,
            in_specs=[
                # Constant block index -> inputs stay VMEM-resident across all
                # grid steps; the n_samples expansion never touches HBM.
                pl.BlockSpec((B, C, L), lambda s, sref: (0, 0, 0)),
                pl.BlockSpec((B, C, Ll), lambda s, sref: (0, 0, 0)),
                pl.BlockSpec((B, C, Lr), lambda s, sref: (0, 0, 0)),
            ],
            out_specs=pl.BlockSpec((ts, B, C, Lt),
                                   lambda s, sref: (s, 0, 0, 0)),
        ),
        compiler_params=pltpu.CompilerParams(
            dimension_semantics=("parallel",),
            vmem_limit_bytes=32 * 1024 * 1024),
        cost_estimate=cost,
    )(seed, theta, left_flank, right_flank)

    # (S, B, C, Lt) -> (S*B, C, Lt): free leading-dim metadata reshape,
    # identical row ordering to torch .flatten(0, 1).
    return out4.reshape(S * B, C, Lt)


if __name__ == "__main__":
    key = jax.random.PRNGKey(0)
    k_theta, k_lf, k_rf, k_sample = jax.random.split(key, 4)

    B, C, L, L_FLANK = 2, 4, 16, 8
    N_SAMPLES, TAU = 2, 1.0

    # deterministic parameter / buffer init (shapes from the module __init__)
    theta = jax.random.normal(k_theta, (B, C, L), dtype=jnp.float32)
    left_flank = jax.nn.one_hot(
        jax.random.randint(k_lf, (B, L_FLANK), 0, C), C, axis=1,
        dtype=jnp.float32)                                   # (B, C, L_FLANK)
    right_flank = jax.nn.one_hot(
        jax.random.randint(k_rf, (B, L_FLANK), 0, C), C, axis=1,
        dtype=jnp.float32)                                   # (B, C, L_FLANK)

    out = gumbel_softmax_parameters_forward(
        theta, left_flank, right_flank, k_sample,
        n_samples=N_SAMPLES, tau=TAU)
    out = jax.block_until_ready(out)

    expected_shape = (N_SAMPLES * B, C, L_FLANK + L + L_FLANK)
    assert out.shape == expected_shape, (out.shape, expected_shape)

    # every position is exactly a one-hot column over the C channels
    col_sums = jnp.sum(out, axis=1)
    assert jnp.allclose(col_sums, 1.0), "columns are not one-hot"
    assert bool(jnp.all((out == 0.0) | (out == 1.0))), "values not in {0, 1}"

    # fused flank writes must reproduce the n_samples-expanded buffers exactly
    lf_exp = jnp.broadcast_to(left_flank[None],
                              (N_SAMPLES,) + left_flank.shape).reshape(
                                  N_SAMPLES * B, C, L_FLANK)
    rf_exp = jnp.broadcast_to(right_flank[None],
                              (N_SAMPLES,) + right_flank.shape).reshape(
                                  N_SAMPLES * B, C, L_FLANK)
    assert bool(jnp.all(out[:, :, :L_FLANK] == lf_exp)), "left flank mismatch"
    assert bool(jnp.all(out[:, :, L_FLANK + L:] == rf_exp)), "right flank mismatch"

    print("KERNEL_OK")
</pallas_src>

<mosaic_0001>
module attributes {stable_mosaic.version = 11 : i64} {
  func.func @_gumbel_onehot_kernel(%arg0: i32, %arg1: memref<1xi32, #tpu.memory_space<smem>>, %arg2: memref<2x4x16xf32, #tpu.memory_space<vmem>>, %arg3: memref<2x4x8xf32, #tpu.memory_space<vmem>>, %arg4: memref<2x4x8xf32, #tpu.memory_space<vmem>>, %arg5: memref<1x2x4x32xf32, #tpu.memory_space<vmem>>) attributes {dimension_semantics = [#tpu.dimension_semantics<parallel>], iteration_bounds = array<i64: 2>, scalar_prefetch = 1 : i64, scratch_operands = 0 : i64, tpu.core_type = #tpu.core_type<tc>, window_params = [{pipeline_mode = #tpu.pipeline_mode<synchronous>, transform_indices = @transform_0, window_bounds = array<i64: 2, 4, 16>}, {pipeline_mode = #tpu.pipeline_mode<synchronous>, transform_indices = @transform_1, window_bounds = array<i64: 2, 4, 8>}, {pipeline_mode = #tpu.pipeline_mode<synchronous>, transform_indices = @transform_2, window_bounds = array<i64: 2, 4, 8>}, {transform_indices = @transform_3, window_bounds = array<i64: 1, 2, 4, 32>}]} {
    %c0 = arith.constant 0 : index
    %0 = memref.load %arg1[%c0] : memref<1xi32, #tpu.memory_space<smem>>
    %c128_i32 = arith.constant 128 : i32
    %1 = arith.muli %arg0, %c128_i32 : i32
    %2 = arith.addi %0, %1 : i32
    %3 = tpu.iota {dimensions = array<i32: 0>} : vector<1x2x4x16xi32>
    %4 = tpu.iota {dimensions = array<i32: 1>} : vector<1x2x4x16xi32>
    %5 = tpu.iota {dimensions = array<i32: 2>} : vector<1x2x4x16xi32>
    %6 = tpu.iota {dimensions = array<i32: 3>} : vector<1x2x4x16xi32>
    %c2_i32 = arith.constant 2 : i32
    %7 = vector.broadcast %c2_i32 : i32 to vector<1x2x4x16xi32>
    %8 = arith.muli %3, %7 : vector<1x2x4x16xi32>
    %9 = arith.addi %8, %4 : vector<1x2x4x16xi32>
    %c4_i32 = arith.constant 4 : i32
    %10 = vector.broadcast %c4_i32 : i32 to vector<1x2x4x16xi32>
    %11 = arith.muli %9, %10 : vector<1x2x4x16xi32>
    %12 = arith.addi %11, %5 : vector<1x2x4x16xi32>
    %c16_i32 = arith.constant 16 : i32
    %13 = vector.broadcast %c16_i32 : i32 to vector<1x2x4x16xi32>
    %14 = arith.muli %12, %13 : vector<1x2x4x16xi32>
    %15 = arith.addi %14, %6 : vector<1x2x4x16xi32>
    %16 = vector.broadcast %2 : i32 to vector<1x2x4x16xi32>
    %17 = arith.addi %15, %16 : vector<1x2x4x16xi32>
    %c16_i32_0 = arith.constant 16 : i32
    %18 = vector.broadcast %c16_i32_0 : i32 to vector<1x2x4x16xi32>
    %19 = arith.shrui %17, %18 : vector<1x2x4x16xi32>
    %20 = arith.xori %17, %19 : vector<1x2x4x16xi32>
    %c2146121005_i32 = arith.constant 2146121005 : i32
    %21 = vector.broadcast %c2146121005_i32 : i32 to vector<1x2x4x16xi32>
    %22 = arith.muli %20, %21 : vector<1x2x4x16xi32>
    %c15_i32 = arith.constant 15 : i32
    %23 = vector.broadcast %c15_i32 : i32 to vector<1x2x4x16xi32>
    %24 = arith.shrui %22, %23 : vector<1x2x4x16xi32>
    %25 = arith.xori %22, %24 : vector<1x2x4x16xi32>
    %c-2073254261_i32 = arith.constant -2073254261 : i32
    %26 = vector.broadcast %c-2073254261_i32 : i32 to vector<1x2x4x16xi32>
    %27 = arith.muli %25, %26 : vector<1x2x4x16xi32>
    %c16_i32_1 = arith.constant 16 : i32
    %28 = vector.broadcast %c16_i32_1 : i32 to vector<1x2x4x16xi32>
    %29 = arith.shrui %27, %28 : vector<1x2x4x16xi32>
    %30 = arith.xori %27, %29 : vector<1x2x4x16xi32>
    %c8388606_i32 = arith.constant 8388606 : i32
    %31 = vector.broadcast %c8388606_i32 : i32 to vector<1x2x4x16xi32>
    %32 = arith.andi %30, %31 : vector<1x2x4x16xi32>
    %c1065353217_i32 = arith.constant 1065353217 : i32
    %33 = vector.broadcast %c1065353217_i32 : i32 to vector<1x2x4x16xi32>
    %34 = arith.ori %32, %33 : vector<1x2x4x16xi32>
    %35 = tpu.bitcast %34 : vector<1x2x4x16xi32> -> vector<1x2x4x16xf32>
    %cst = arith.constant 1.000000e+00 : f32
    %36 = vector.broadcast %cst : f32 to vector<1x2x4x16xf32>
    %37 = arith.subf %35, %36 : vector<1x2x4x16xf32>
    %38 = math.log %37 : vector<1x2x4x16xf32>
    %cst_2 = arith.constant 0.000000e+00 : f32
    %39 = vector.broadcast %cst_2 : f32 to vector<1x2x4x16xf32>
    %40 = arith.subf %39, %38 : vector<1x2x4x16xf32>
    %c0_3 = arith.constant 0 : index
    %c0_4 = arith.constant 0 : index
    %c0_5 = arith.constant 0 : index
    %41 = vector.load %arg2[%c0_3, %c0_4, %c0_5] : memref<2x4x16xf32, #tpu.memory_space<vmem>>, vector<2x4x16xf32>
    %cst_6 = arith.constant 0.000000e+00 : f32
    %42 = vector.broadcast %cst_6 : f32 to vector<2x4x16xf32>
    %43 = arith.subf %42, %41 : vector<2x4x16xf32>
    %44 = math.exp %43 : vector<2x4x16xf32>
    %45 = vector.shape_cast %44 : vector<2x4x16xf32> to vector<1x2x4x16xf32>
    %46 = arith.mulf %40, %45 : vector<1x2x4x16xf32>
    %cst_7 = arith.constant dense<0x7F800000> : vector<1x2x16xf32>
    %47 = vector.multi_reduction <minimumf>, %46, %cst_7 [2] : vector<1x2x4x16xf32> to vector<1x2x16xf32>
    %48 = vector.shape_cast %47 : vector<1x2x16xf32> to vector<1x2x1x16xf32>
    %49 = arith.sitofp %5 : vector<1x2x4x16xi32> to vector<1x2x4x16xf32>
    %50 = vector.broadcast %48 : vector<1x2x1x16xf32> to vector<1x2x4x16xf32>
    %51 = arith.cmpf ole, %46, %50 : vector<1x2x4x16xf32>
    %cst_8 = arith.constant 4.000000e+00 : f32
    %52 = vector.broadcast %cst_8 : f32 to vector<1x2x4x16xf32>
    %53 = arith.select %51, %49, %52 : vector<1x2x4x16xi1>, vector<1x2x4x16xf32>
    %cst_9 = arith.constant dense<0x7F800000> : vector<1x2x16xf32>
    %54 = vector.multi_reduction <minimumf>, %53, %cst_9 [2] : vector<1x2x4x16xf32> to vector<1x2x16xf32>
    %55 = vector.shape_cast %54 : vector<1x2x16xf32> to vector<1x2x1x16xf32>
    %56 = vector.broadcast %55 : vector<1x2x1x16xf32> to vector<1x2x4x16xf32>
    %57 = arith.cmpf oeq, %49, %56 : vector<1x2x4x16xf32>
    %58 = arith.extui %57 : vector<1x2x4x16xi1> to vector<1x2x4x16xi32>
    %59 = arith.sitofp %58 : vector<1x2x4x16xi32> to vector<1x2x4x16xf32>
    %c0_10 = arith.constant 0 : index
    %c0_11 = arith.constant 0 : index
    %c0_12 = arith.constant 0 : index
    %60 = vector.load %arg3[%c0_10, %c0_11, %c0_12] : memref<2x4x8xf32, #tpu.memory_space<vmem>>, vector<2x4x8xf32>
    %61 = vector.shape_cast %60 : vector<2x4x8xf32> to vector<1x2x4x8xf32>
    %c0_13 = arith.constant 0 : index
    %c0_14 = arith.constant 0 : index
    %c0_15 = arith.constant 0 : index
    %62 = vector.load %arg4[%c0_13, %c0_14, %c0_15] : memref<2x4x8xf32, #tpu.memory_space<vmem>>, vector<2x4x8xf32>
    %63 = vector.shape_cast %62 : vector<2x4x8xf32> to vector<1x2x4x8xf32>
    %64 = tpu.concatenate %61, %59, %63 in 3 : vector<1x2x4x8xf32>, vector<1x2x4x16xf32>, vector<1x2x4x8xf32> -> vector<1x2x4x32xf32>
    %c0_16 = arith.constant 0 : index
    %c0_17 = arith.constant 0 : index
    %c0_18 = arith.constant 0 : index
    %c0_19 = arith.constant 0 : index
    %65 = vector.load %arg5[%c0_16, %c0_17, %c0_18, %c0_19] : memref<1x2x4x32xf32, #tpu.memory_space<vmem>>, vector<1x2x4x32xf32>
    tpu.vector_store %arg5[%c0_16, %c0_17, %c0_18, %c0_19], %64 {strides = array<i32>} : memref<1x2x4x32xf32, #tpu.memory_space<vmem>>, vector<1x2x4x32xf32>,
    return
  }
  func.func @transform_0(%arg0: i32, %arg1: memref<1xi32, #tpu.memory_space<smem>>) -> (i32, i32, i32) {
    %c0_i32 = arith.constant 0 : i32
    %c0_i32_0 = arith.constant 0 : i32
    %c0_i32_1 = arith.constant 0 : i32
    %c0_i32_2 = arith.constant 0 : i32
    return %c0_i32, %c0_i32_0, %c0_i32_1 : i32, i32, i32
  }
  func.func @transform_1(%arg0: i32, %arg1: memref<1xi32, #tpu.memory_space<smem>>) -> (i32, i32, i32) {
    %c0_i32 = arith.constant 0 : i32
    %c0_i32_0 = arith.constant 0 : i32
    %c0_i32_1 = arith.constant 0 : i32
    %c0_i32_2 = arith.constant 0 : i32
    return %c0_i32, %c0_i32_0, %c0_i32_1 : i32, i32, i32
  }
  func.func @transform_2(%arg0: i32, %arg1: memref<1xi32, #tpu.memory_space<smem>>) -> (i32, i32, i32) {
    %c0_i32 = arith.constant 0 : i32
    %c0_i32_0 = arith.constant 0 : i32
    %c0_i32_1 = arith.constant 0 : i32
    %c0_i32_2 = arith.constant 0 : i32
    return %c0_i32, %c0_i32_0, %c0_i32_1 : i32, i32, i32
  }
  func.func @transform_3(%arg0: i32, %arg1: memref<1xi32, #tpu.memory_space<smem>>) -> (i32, i32, i32, i32) {
    %c0_i32 = arith.constant 0 : i32
    %c0_i32_0 = arith.constant 0 : i32
    %c0_i32_1 = arith.constant 0 : i32
    %c0_i32_2 = arith.constant 0 : i32
    return %arg0, %c0_i32, %c0_i32_0, %c0_i32_1 : i32, i32, i32, i32
  }
}

</mosaic_0001>

<llo_original>
// kernel: tpu_custom_call.1
$region0: #{tpu_custom_call.1}
  #allocation0 [shape = 'u32[]', space=smem, size = 0x4, offset = 0x4, fixed_abs, tag = 'smem constant byte address 0x4 - core index']
  #allocation1 [shape = 'u32[144,128]{1,0:T(1,128)}', space=vmem, size = 0x12000, scoped, tag = 'internal scratch']
  #allocation2 [shape = 's32[1]{0}', space=sflag, size = 0x4, scoped, tag = 'scoped memory for tpu_custom_call.1']
  #allocation3 [shape = 's32[1]{0:T(128)S(6)}', space=smem, size = 0x200, scoped, tag = 'prefetched SMEM operand 0']
  %s0 = inlined_call_operand.<no memory space> [shape: s32[1], index: 0, kind: input, shape index: {}]
  %s1 = inlined_call_operand.hbm [shape: f32[2,4,16], index: 1, kind: input, shape index: {}]
  %s2 = inlined_call_operand.hbm [shape: f32[2,4,8], index: 2, kind: input, shape index: {}]
  %s3 = inlined_call_operand.vmem [shape: f32[2,4,8], index: 3, kind: input, shape index: {}]
  %s4 = inlined_call_operand.hbm [shape: f32[2,2,4,32], index: 4, kind: output, shape index: {}]
  %s5 = sld [smem:[#allocation0]]
  $region53: #{tpu_custom_call.1} parent=0
    _
  %s7 = ssub.s32 1, %s5
  %s8 = scalar_select 0, %s7, %s5
  %9 = sst [smem:[#allocation3]] %s0
  $region1: #{tpu_custom_call.1} parent=0
    #allocation4 [shape = 'u8[4096]{0}', space=vmem, size = 0x1000, scoped, tag = 'input window, operand 1, single buffered']
    #allocation5 [shape = 's32[2]{0}', space=sflag, size = 0x8, scoped, tag = 'scoped memory for tpu_custom_call.1']
    #allocation6 [shape = 's32[2]{0}', space=sflag, size = 0x8, scoped, tag = 'scoped memory for tpu_custom_call.1']
    #allocation7 [shape = 'u8[4096]{0}', space=vmem, size = 0x1000, scoped, tag = 'input window, operand 2, single buffered']
    #allocation8 [shape = 's32[1]{0}', space=sflag, size = 0x4, scoped, tag = 'scoped memory for tpu_custom_call.1']
    #allocation9 [shape = 'u8[8192]{0}', space=vmem, size = 0x2000, scoped, tag = 'output window, operand 0']
    %10 = vsyncpa [#allocation5], 0
    %11 = vsyncpa [#allocation8], 0
    %12 = vsyncpa [#allocation6], 0
    %s13 = scalar_lea.sflag [#allocation6], 1
    %14 = vsyncpa %s13, 0
    loop: start=0, step=1, limit=4
    $region2: #{tpu_custom_call.1} parent=1 // loop_pre_header
      _
    $region3: #{tpu_custom_call.1} parent=1 // loop_header
      %s16 = sphi 0, %s20
      %p17 = scmp.ge.s32.totalorder %s16, 4
      %s24 = sphi 0, %s24
      %s26 = sphi 0, %s24
      %s27 = sphi 0, %s26
      %s41 = sphi 0, %s27
      %s45 = sphi 0, %s45
      %s47 = sphi 0, %s45
      %s48 = sphi 0, %s47
      %s62 = sphi 0, %s48
      %s66 = sphi 0, %s66
      %s68 = sphi 0, %s66
      %s69 = sphi 0, %s68
      %s83 = sphi 0, %s69
      %s89 = sphi 0, %s91
      %s92 = sphi 0, %s89
      %s93 = sphi 0, %s92
      %s109 = sphi 0, %s93
    $region4: #{tpu_custom_call.1} parent=1 // loop_header_branch
      %19 = sbr.rel (%p17) target = $region8
    $region5: #{tpu_custom_call.1} parent=1 // loop_body
      %s21 = ssub.s32 %s16, 1
      %s22 = ssub.s32 %s16, 2
      %s23 = sadd.s32 %s16, 1
      %s25 = sadd.s32 %s24, 1
      %p28 = scmp.eq.s32.totalorder %s16, 1
      %p29 = scmp.ne.s32.totalorder %s24, %s26
      %p30 = scmp.eq.s32.totalorder %s16, 0
      %p31 = por %p29, %p30
      %p32 = scmp.ne.s32.totalorder %s24, %s26
      %p33 = scmp.eq.s32.totalorder %s21, 1
      %p34 = por %p32, %p33
      %p35 = scmp.ne.s32.totalorder %s26, %s27
      %p36 = scmp.eq.s32.totalorder %s21, 0
      %p37 = por %p35, %p36
      %p38 = scmp.ne.s32.totalorder %s26, %s27
      %p39 = scmp.eq.s32.totalorder %s22, 1
      %p40 = por %p38, %p39
      %p42 = scmp.ne.s32.totalorder %s27, %s41
      %p43 = scmp.eq.s32.totalorder %s22, 0
      %p44 = por %p42, %p43
      %s46 = sadd.s32 %s45, 1
      %p49 = scmp.eq.s32.totalorder %s16, 1
      %p50 = scmp.ne.s32.totalorder %s45, %s47
      %p51 = scmp.eq.s32.totalorder %s16, 0
      %p52 = por %p50, %p51
      %p53 = scmp.ne.s32.totalorder %s45, %s47
      %p54 = scmp.eq.s32.totalorder %s21, 1
      %p55 = por %p53, %p54
      %p56 = scmp.ne.s32.totalorder %s47, %s48
      %p57 = scmp.eq.s32.totalorder %s21, 0
      %p58 = por %p56, %p57
      %p59 = scmp.ne.s32.totalorder %s47, %s48
      %p60 = scmp.eq.s32.totalorder %s22, 1
      %p61 = por %p59, %p60
      %p63 = scmp.ne.s32.totalorder %s48, %s62
      %p64 = scmp.eq.s32.totalorder %s22, 0
      %p65 = por %p63, %p64
      %s67 = sadd.s32 %s66, 1
      %p70 = scmp.eq.s32.totalorder %s16, 1
      %p71 = scmp.ne.s32.totalorder %s66, %s68
      %p72 = scmp.eq.s32.totalorder %s16, 0
      %p73 = por %p71, %p72
      %p74 = scmp.ne.s32.totalorder %s66, %s68
      %p75 = scmp.eq.s32.totalorder %s21, 1
      %p76 = por %p74, %p75
      %p77 = scmp.ne.s32.totalorder %s68, %s69
      %p78 = scmp.eq.s32.totalorder %s21, 0
      %p79 = por %p77, %p78
      %p80 = scmp.ne.s32.totalorder %s68, %s69
      %p81 = scmp.eq.s32.totalorder %s22, 1
      %p82 = por %p80, %p81
      %p84 = scmp.ne.s32.totalorder %s69, %s83
      %p85 = scmp.eq.s32.totalorder %s22, 0
      %p86 = por %p84, %p85
      %s87 = ssub.s32 %s16, %s23
      %p88 = scmp.eq.s32.totalorder %s87, 0
      %s90 = sadd.s32 %s89, 1
      %s91 = scalar_select %p88, %s89, %s90
      %p94 = pneg %p88
      %p95 = scmp.eq.s32.totalorder %s16, 1
      %p96 = por %p94, %p95
      %p97 = scmp.ne.s32.totalorder %s89, %s92
      %p98 = scmp.eq.s32.totalorder %s16, 0
      %p99 = por %p97, %p98
      %p100 = scmp.ne.s32.totalorder %s89, %s92
      %p101 = scmp.eq.s32.totalorder %s21, 1
      %p102 = por %p100, %p101
      %p103 = scmp.ne.s32.totalorder %s92, %s93
      %p104 = scmp.eq.s32.totalorder %s21, 0
      %p105 = por %p103, %p104
      %p106 = scmp.ne.s32.totalorder %s92, %s93
      %p107 = scmp.eq.s32.totalorder %s22, 1
      %p108 = por %p106, %p107
      %p110 = scmp.ne.s32.totalorder %s93, %s109
      %p111 = scmp.eq.s32.totalorder %s22, 0
      %p112 = por %p110, %p111
      %p113 = scmp.le.s32.totalorder 1, %s16
      %p114 = scmp.lt.s32.totalorder %s16, 3
      %p115 = pnand %p113, %p114
      %p116 = pneg %p115
      // Predicated region
      $region9: #{tpu_custom_call.1} parent=5 // pred_check
        _
      $region10: #{tpu_custom_call.1} parent=5 // pred_check_branch
        %118 = sbr.rel (%p115) target = $region12
      $region11: #{tpu_custom_call.1} parent=5 // pred_region
        %s119 = ssub.s32 %s16, 1
        // Predicated region
        $region13: #{tpu_custom_call.1} parent=11 // pred_check
          %p120 = pneg %p37
        $region14: #{tpu_custom_call.1} parent=11 // pred_check_branch
          %122 = sbr.rel (%p120) target = $region16
        $region15: #{tpu_custom_call.1} parent=11 // pred_region
          %s124 = ssub.s32 128, 128
          %125 = vsyncadd [#allocation5], %s124
          %s126 = sshll.u32 [#allocation4], 4
          %s127 = int_to_ptr.vmem [resolvable:$true] %s126
          %132 = dma.hbm_to_vmem [thread:$0]  %s1, 128, %s127, [#allocation5], 64, 64, 4
        $region16: #{tpu_custom_call.1} parent=11 // pred_fallthru
          _
        // Predicated region
        $region17: #{tpu_custom_call.1} parent=11 // pred_check
          %p133 = pneg %p58
        $region18: #{tpu_custom_call.1} parent=11 // pred_check_branch
          %135 = sbr.rel (%p133) target = $region20
        $region19: #{tpu_custom_call.1} parent=11 // pred_region
          %s137 = ssub.s32 128, 128
          %138 = vsyncadd [#allocation8], %s137
          %s139 = sshll.u32 [#allocation7], 4
          %s140 = int_to_ptr.vmem [resolvable:$true] %s139
          %145 = dma.hbm_to_vmem [thread:$0]  %s2, 128, %s140, [#allocation8], 64, 64, 4
        $region20: #{tpu_custom_call.1} parent=11 // pred_fallthru
          _
        // Predicated region
        $region21: #{tpu_custom_call.1} parent=11 // pred_check
          %p146 = pneg %p79
        $region22: #{tpu_custom_call.1} parent=11 // pred_check_branch
          %148 = sbr.rel (%p146) target = $region24
        $region23: #{tpu_custom_call.1} parent=11 // pred_region
          _
        $region24: #{tpu_custom_call.1} parent=11 // pred_fallthru
          _
      $region12: #{tpu_custom_call.1} parent=5 // pred_fallthru
        _
      %p149 = scmp.lt.s32.totalorder %s16, 2
      // Predicated region
      $region25: #{tpu_custom_call.1} parent=5 // pred_check
        %p150 = pneg %p149
      $region26: #{tpu_custom_call.1} parent=5 // pred_check_branch
        %152 = sbr.rel (%p150) target = $region28
      $region27: #{tpu_custom_call.1} parent=5 // pred_region
        _
      $region28: #{tpu_custom_call.1} parent=5 // pred_fallthru
        _
      %p153 = scmp.le.s32.totalorder 1, %s16
      %p154 = scmp.lt.s32.totalorder %s16, 3
      %p155 = pnand %p153, %p154
      %p156 = pneg %p155
      // Predicated region
      $region29: #{tpu_custom_call.1} parent=5 // pred_check
        _
      $region30: #{tpu_custom_call.1} parent=5 // pred_check_branch
        %158 = sbr.rel (%p155) target = $region32
      $region31: #{tpu_custom_call.1} parent=5 // pred_region
        %s159 = ssub.s32 %s16, 1
        // Predicated region
        $region33: #{tpu_custom_call.1} parent=31 // pred_check
          %p160 = pneg %p37
        $region34: #{tpu_custom_call.1} parent=31 // pred_check_branch
          %162 = sbr.rel (%p160) target = $region36
        $region35: #{tpu_custom_call.1} parent=31 // pred_region
          %163 = dma.done [#allocation5], 128
        $region36: #{tpu_custom_call.1} parent=31 // pred_fallthru
          _
        // Predicated region
        $region37: #{tpu_custom_call.1} parent=31 // pred_check
          %p164 = pneg %p58
        $region38: #{tpu_custom_call.1} parent=31 // pred_check_branch
          %166 = sbr.rel (%p164) target = $region40
        $region39: #{tpu_custom_call.1} parent=31 // pred_region
          %167 = dma.done [#allocation8], 128
        $region40: #{tpu_custom_call.1} parent=31 // pred_fallthru
          _
        %p168 = pneg %p37
        %p169 = pneg %p34
        %p170 = pneg %p58
        %p171 = pneg %p55
        %p172 = pneg %p79
        %p173 = pneg %p76
        %p174 = pneg %p105
        %p175 = pneg %p102
        %s176 = sand.u32 %s92, 1
        %s177 = scalar_lea.sflag [#allocation6], %s176
        %s178 = sand.u32 %s92, 1
        %s179 = smul.addr %s178, 8
        %s180 = scalar_lea.vmem [#allocation9], %s179
        %s181 = sld [smem:[#allocation3]]
        %s182 = smul.u32 %s21, 128
        %s183 = sadd.s32 %s181, %s182
        %v184 = vlaneseq
        %v185 = vshrl.u32 %v184, 7
        %v186 = vlaneseq
        %v187 = vand.u32 %v186, 127
        %v188 = vadd.s32 %v185, 4
        %v189 = vmul.u32 %v185, 16
        %v190 = vmul.u32 %v188, 16
        %v191 = vadd.s32 %v189, %v187
        %v192 = vadd.s32 %v190, %v187
        %v193 = vstv %s183
        %v194 = vadd.s32 %v191, %v193
        %v195 = vadd.s32 %v192, %v193
        %v196 = vshrl.u32 %v194, 16
        %v197 = vshrl.u32 %v195, 16
        %v198 = vxor.u32 %v194, %v196
        %v199 = vxor.u32 %v195, %v197
        %v200 = vmul.u32 %v198, 2146121005
        %v201 = vmul.u32 %v199, 2146121005
        %v202 = vshrl.u32 %v200, 15
        %v203 = vshrl.u32 %v201, 15
        %v204 = vxor.u32 %v200, %v202
        %v205 = vxor.u32 %v201, %v203
        %v206 = vmul.u32 %v204, 2221713035
        %v207 = vmul.u32 %v205, 2221713035
        %v208 = vshrl.u32 %v206, 16
        %v209 = vshrl.u32 %v207, 16
        %v210 = vxor.u32 %v206, %v208
        %v211 = vxor.u32 %v207, %v209
        %v212 = vand.u32 %v210, 8388606
        %v213 = vand.u32 %v211, 8388606
        %v214 = vor.u32 %v212, 1065353217
        %v215 = vor.u32 %v213, 1065353217
        %v218 = vsub.f32 %v214, 1.0
        %v219 = vsub.f32 %v215, 1.0
        %v220 = vlog2.pop %v218
        %v221 = vmul.f32 %v220, 0.6931472
        %v222 = vlog2.pop %v219
        %v223 = vmul.f32 %v222, 0.6931472
        %v224 = vsub.f32 0.0, %v221
        %v225 = vsub.f32 0.0, %v223
        %v226 = vld [vmem:[#allocation4] sm:$0xf]
        %v227 = vld [vmem:[#allocation4 + $0x4] sm:$0xf]
        %v228 = vsub.f32 0.0, %v226
        %v229 = vsub.f32 0.0, %v227
        %v230 = vmul.f32 %v228, 1.442695
        %v231 = vpow.pop %v230
        %v232 = vmul.f32 %v229, 1.442695
        %v233 = vpow.pop %v232
        %v234 = vmul.f32 %v224, %v231
        %v235 = vmul.f32 %v225, %v233
        %vm236 = vcmask 125952
        %v237 = vsel %vm236, %v234, inf
        %v238 = vrot.slane %v237, 4
        %v239 = vmin.f32 %v237, %v238
        %v240 = vrot.slane %v239, 2
        %v241 = vmin.f32 %v239, %v240
        %v242 = vrot.slane %v241, 1
        %v243 = vmin.f32 %v241, %v242
        %v244 = vsel %vm236, %v235, inf
        %v245 = vrot.slane %v244, 4
        %v246 = vmin.f32 %v244, %v245
        %v247 = vrot.slane %v246, 2
        %v248 = vmin.f32 %v246, %v247
        %v249 = vrot.slane %v248, 1
        %v250 = vmin.f32 %v248, %v249
        %v251 = vcvt.s32.f32 %v185
        %vm252 = vcmp.le.f32.partialorder %v234, %v243
        %vm253 = vcmp.le.f32.partialorder %v235, %v250
        %v254 = vsel %vm252, %v251, 4.0
        %v255 = vsel %vm253, %v251, 4.0
        %v256 = vsel %vm236, %v254, inf
        %v257 = vrot.slane %v256, 4
        %v258 = vmin.f32 %v256, %v257
        %v259 = vrot.slane %v258, 2
        %v260 = vmin.f32 %v258, %v259
        %v261 = vrot.slane %v260, 1
        %v262 = vmin.f32 %v260, %v261
        %v263 = vsel %vm236, %v255, inf
        %v264 = vrot.slane %v263, 4
        %v265 = vmin.f32 %v263, %v264
        %v266 = vrot.slane %v265, 2
        %v267 = vmin.f32 %v265, %v266
        %v268 = vrot.slane %v267, 1
        %v269 = vmin.f32 %v267, %v268
        %vm270 = vcmp.eq.f32.partialorder %v251, %v262
        %vm271 = vcmp.eq.f32.partialorder %v251, %v269
        %v272 = vsel %vm270, 1, 0
        %v273 = vsel %vm271, 1, 0
        %v274 = vcvt.s32.f32 %v272
        %v275 = vcvt.s32.f32 %v273
        %v276 = vld [vmem:[#allocation7] sm:$0xf]
        %v277 = vld [vmem:[#allocation7 + $0x4] sm:$0xf]
        %v278 = vld [vmem:[%s3] sm:$0xf]
        %v279 = vld [vmem:[%s3 + $0x4] sm:$0xf]
        %282 = vrot.lane.b32.xlu0 %v274, 8
        %v283 = vpop.permute.xlu0 %282
        %284 = vrot.lane.b32.xlu0 %v275, 8
        %v285 = vpop.permute.xlu0 %284
        %290 = vrot.lane.b32.xlu0 %v278, 24
        %v291 = vpop.permute.xlu0 %290
        %292 = vrot.lane.b32.xlu0 %v279, 24
        %v293 = vpop.permute.xlu0 %292
        %vm296 = vcmask 64512
        %v297 = vsel %vm296, %v276, %v283
        %v298 = vsel %vm296, %v277, %v285
        %vm299 = vcmask 195584
        %v300 = vsel %vm299, %v297, %v291
        %v301 = vsel %vm299, %v298, %v293
        %vm302 = vcmask 257024
        %303 = vst.msk [vmem:[%s180] sm:$0xf] %vm302, %v300
        %304 = vst.msk [vmem:[%s180 + $0x4] sm:$0xf] %vm302, %v301
        %s305 = sand.u32 %s92, 1
        %s306 = scalar_lea.sflag [#allocation6], %s305
        %s307 = sand.u32 %s92, 1
        %s308 = smul.addr %s307, 8
        %s309 = scalar_lea.vmem [#allocation9], %s308
        // Predicated region
        $region41: #{tpu_custom_call.1} parent=31 // pred_check
          %p310 = pneg %p102
        $region42: #{tpu_custom_call.1} parent=31 // pred_check_branch
          %312 = sbr.rel (%p310) target = $region44
        $region43: #{tpu_custom_call.1} parent=31 // pred_region
          %s314 = ssub.s32 128, 128
          %315 = vsyncadd %s306, %s314
          %s316 = smul.addr %s21, 2
          %s317 = smul.addr %s316, 64
          %s318 = scalar_lea.hbm %s4, %s317
          %s319 = sshll.u32 %s309, 4
          %s320 = int_to_ptr.vmem [resolvable:$true] %s319
          %325 = dma.vmem_to_hbm [thread:$0]  %s320, 128, %s318, %s306, 64, 64, 4
        $region44: #{tpu_custom_call.1} parent=31 // pred_fallthru
          _
      $region32: #{tpu_custom_call.1} parent=5 // pred_fallthru
        _
      %p326 = scmp.le.s32.totalorder 2, %s16
      // Predicated region
      $region45: #{tpu_custom_call.1} parent=5 // pred_check
        %p327 = pneg %p326
      $region46: #{tpu_custom_call.1} parent=5 // pred_check_branch
        %329 = sbr.rel (%p327) target = $region48
      $region47: #{tpu_custom_call.1} parent=5 // pred_region
        %s330 = ssub.s32 %s16, 2
        // Predicated region
        $region49: #{tpu_custom_call.1} parent=47 // pred_check
          %p331 = pneg %p108
        $region50: #{tpu_custom_call.1} parent=47 // pred_check_branch
          %333 = sbr.rel (%p331) target = $region52
        $region51: #{tpu_custom_call.1} parent=47 // pred_region
          %s334 = sand.u32 %s93, 1
          %s335 = scalar_lea.sflag [#allocation6], %s334
          %s336 = sand.u32 %s93, 1
          %s337 = smul.addr %s336, 8
          %s338 = scalar_lea.vmem [#allocation9], %s337
          %339 = dma.done %s335, 128
        $region52: #{tpu_custom_call.1} parent=47 // pred_fallthru
          _
      $region48: #{tpu_custom_call.1} parent=5 // pred_fallthru
        _
    $region6: #{tpu_custom_call.1} parent=1 // loop_footer
      %s20 = sadd.s32 1, %s16
    $region7: #{tpu_custom_call.1} parent=1 // loop_footer_branch
      %15 = sbr.rel target = $region3
    $region8: #{tpu_custom_call.1} parent=1 // loop_exit
      _
    %340 = vsyncpa [#allocation5], 1
    %s341 = scalar_lea.sflag [#allocation5], 1
    %342 = vsyncpa %s341, 1
    %343 = vsyncpa [#allocation8], 1
    %344 = vsyncpa [#allocation6], 1
    %s345 = scalar_lea.sflag [#allocation6], 1
    %346 = vsyncpa %s345, 1

</llo_original>
